<compile_context>
chip_gen: v7x
topology: tpu7x:2x2x1
jax: 0.10.0
libtpu: 0.0.40
codegen_flags: <defaults>
</compile_context>

<pallas_src>
import jax
import jax.numpy as jnp
from jax.experimental import pallas as pl
from jax.experimental.pallas import tpu as pltpu


def _round_up(x, m):
    return -(-x // m) * m


def _block_byte_target():
    """Per-array data bytes per block.

    ~2 MiB fits comfortably under the v5e 16 MiB / v6e 32 MiB scoped-VMEM
    defaults with double buffering (2 arrays x 2 bufs x 2 MiB = 8 MiB).
    On v7x (~3.2 TB/s HBM) the fixed ~0.35 us per-step overhead dominates at
    small blocks, so bump to 4 MiB (16 MiB total, still under the 32 MiB
    scoped default).
    """
    try:
        kind = jax.devices()[0].device_kind.lower()
    except Exception:
        kind = ""
    if "v7" in kind or "7x" in kind:
        return 4 << 20
    return 2 << 20


def _scaling_kernel(inv_ref, bias_ref, x_ref, o_ref):
    # inv_ref / bias_ref: (BR, 1) f32 per-row constants (broadcast over lanes).
    # x_ref / o_ref: (BR, BC) lane-dense data blocks.
    x = x_ref[...].astype(jnp.float32)
    o_ref[...] = (x * inv_ref[...] + bias_ref[...]).astype(o_ref.dtype)


def scaling_layer(x, shift, scale):
    """x: (N, C, H, W); shift/scale: (C,) float32. Returns (x - shift) / scale."""
    N, C, H, W = x.shape
    rows, cols = N * C, H * W

    itemsize = jnp.dtype(x.dtype).itemsize
    sub = max(8, 32 // itemsize)          # sublane alignment: 8 f32 / 16 bf16 / 32 int8
    target_elems = max(_block_byte_target() // itemsize, sub * 128)

    # Fold (x - shift) / scale into x * inv_scale + bias.  Keep constants in
    # f32 (PyTorch buffers are f32); only the output is cast to x.dtype.
    inv_scale = (1.0 / scale).astype(jnp.float32)
    bias = (-shift / scale).astype(jnp.float32)
    # One row per (n, c) slab; channel of row r is r % C.
    row_inv = jnp.tile(inv_scale, N).reshape(rows, 1)
    row_bias = jnp.tile(bias, N).reshape(rows, 1)

    # Free view of contiguous NCHW: lane axis = full spatial extent.
    x2 = x.reshape(rows, cols)

    # ---- Block sizing -------------------------------------------------------
    if cols <= target_elems:
        # Full-row blocks: every DMA is one contiguous HBM burst; tile rows only.
        bc = cols
        br = max(sub, (target_elems // cols) // sub * sub)
        br = min(br, _round_up(rows, sub))
        if br >= rows:
            br = rows
    else:
        # Spatial extent alone exceeds the budget: minimal sublane rows, wide
        # lane blocks in multiples of 128 (ragged edge handled by cdiv grid).
        br = min(rows, sub)
        bc = max(128, (target_elems // max(br, 1)) // 128 * 128)
        bc = min(bc, _round_up(cols, 128))
        if bc >= cols:
            bc = cols

    row_blocks = pl.cdiv(rows, br)
    col_blocks = pl.cdiv(cols, bc)

    # Keep the per-row constants resident across the inner loop: either the
    # row axis is outermost (param block index constant within the inner col
    # loop), or there is a single row block (param index constant everywhere).
    if row_blocks == 1 and col_blocks > 1:
        grid = (col_blocks, row_blocks)
        data_spec = pl.BlockSpec((br, bc), lambda j, i: (i, j))
        param_spec = pl.BlockSpec((br, 1), lambda j, i: (i, 0))
    else:
        grid = (row_blocks, col_blocks)
        data_spec = pl.BlockSpec((br, bc), lambda i, j: (i, j))
        param_spec = pl.BlockSpec((br, 1), lambda i, j: (i, 0))

    out2 = pl.pallas_call(
        _scaling_kernel,
        out_shape=jax.ShapeDtypeStruct((rows, cols), x.dtype),
        grid=grid,
        in_specs=[param_spec, param_spec, data_spec],
        out_specs=data_spec,
        compiler_params=pltpu.CompilerParams(
            dimension_semantics=("parallel", "parallel"),
        ),
    )(row_inv, row_bias, x2)
    return out2.reshape(N, C, H, W)


if __name__ == "__main__":
    # Fixed constants from the module __init__ (registered buffers, not learned).
    shift = jnp.array([-0.030, -0.088, -0.188], dtype=jnp.float32)
    scale = jnp.array([0.458, 0.448, 0.450], dtype=jnp.float32)

    # Small NCHW input consistent with the 3-channel buffers.
    key = jax.random.PRNGKey(0)
    x = jax.random.normal(key, (2, 3, 16, 16), dtype=jnp.float32)

    out = scaling_layer(x, shift, scale)
    out = jax.block_until_ready(out)

    # Reference check (pure JAX, mirrors the PyTorch broadcasting / divide).
    ref = (x - shift[None, :, None, None]) / scale[None, :, None, None]
    assert out.shape == x.shape and out.dtype == x.dtype
    assert jnp.allclose(out, ref, atol=1e-5, rtol=1e-5)

    print("KERNEL_OK")
</pallas_src>

<mosaic_0001>
module attributes {stable_mosaic.version = 11 : i64} {
  func.func @_scaling_kernel(%arg0: i32, %arg1: i32, %arg2: memref<6x1xf32, #tpu.memory_space<vmem>>, %arg3: memref<6x1xf32, #tpu.memory_space<vmem>>, %arg4: memref<6x256xf32, #tpu.memory_space<vmem>>, %arg5: memref<6x256xf32, #tpu.memory_space<vmem>>) attributes {dimension_semantics = [#tpu.dimension_semantics<parallel>, #tpu.dimension_semantics<parallel>], iteration_bounds = array<i64: 1, 1>, scalar_prefetch = 0 : i64, scratch_operands = 0 : i64, tpu.core_type = #tpu.core_type<tc>, window_params = [{transform_indices = @transform_0, window_bounds = array<i64: 6, 1>}, {transform_indices = @transform_1, window_bounds = array<i64: 6, 1>}, {transform_indices = @transform_2, window_bounds = array<i64: 6, 256>}, {transform_indices = @transform_3, window_bounds = array<i64: 6, 256>}]} {
    %c0 = arith.constant 0 : index
    %c0_0 = arith.constant 0 : index
    %0 = vector.load %arg4[%c0, %c0_0] : memref<6x256xf32, #tpu.memory_space<vmem>>, vector<6x256xf32>
    %c0_1 = arith.constant 0 : index
    %c0_2 = arith.constant 0 : index
    %1 = vector.load %arg2[%c0_1, %c0_2] : memref<6x1xf32, #tpu.memory_space<vmem>>, vector<6x1xf32>
    %2 = vector.broadcast %1 : vector<6x1xf32> to vector<6x256xf32>
    %3 = arith.mulf %0, %2 : vector<6x256xf32>
    %c0_3 = arith.constant 0 : index
    %c0_4 = arith.constant 0 : index
    %4 = vector.load %arg3[%c0_3, %c0_4] : memref<6x1xf32, #tpu.memory_space<vmem>>, vector<6x1xf32>
    %5 = vector.broadcast %4 : vector<6x1xf32> to vector<6x256xf32>
    %6 = arith.addf %3, %5 : vector<6x256xf32>
    %c0_5 = arith.constant 0 : index
    %c0_6 = arith.constant 0 : index
    %7 = vector.load %arg5[%c0_5, %c0_6] : memref<6x256xf32, #tpu.memory_space<vmem>>, vector<6x256xf32>
    tpu.vector_store %arg5[%c0_5, %c0_6], %6 {strides = array<i32>} : memref<6x256xf32, #tpu.memory_space<vmem>>, vector<6x256xf32>,
    return
  }
  func.func @transform_0(%arg0: i32, %arg1: i32) -> (i32, i32) {
    %c0_i32 = arith.constant 0 : i32
    %c0_i32_0 = arith.constant 0 : i32
    return %arg0, %c0_i32 : i32, i32
  }
  func.func @transform_1(%arg0: i32, %arg1: i32) -> (i32, i32) {
    %c0_i32 = arith.constant 0 : i32
    %c0_i32_0 = arith.constant 0 : i32
    return %arg0, %c0_i32 : i32, i32
  }
  func.func @transform_2(%arg0: i32, %arg1: i32) -> (i32, i32) {
    %c0_i32 = arith.constant 0 : i32
    return %arg0, %arg1 : i32, i32
  }
  func.func @transform_3(%arg0: i32, %arg1: i32) -> (i32, i32) {
    %c0_i32 = arith.constant 0 : i32
    return %arg0, %arg1 : i32, i32
  }
}

</mosaic_0001>

<llo_original>
// kernel: tpu_custom_call.1
$region0: #{tpu_custom_call.1}
  #allocation0 [shape = 'u32[]', space=smem, size = 0x4, offset = 0x4, fixed_abs, tag = 'smem constant byte address 0x4 - core index']
  #allocation1 [shape = 'u32[144,128]{1,0:T(1,128)}', space=vmem, size = 0x12000, scoped, tag = 'internal scratch']
  %s0 = inlined_call_operand.vmem [shape: f32[6,1], index: 0, kind: input, shape index: {}]
  %s1 = inlined_call_operand.vmem [shape: f32[6,1], index: 1, kind: input, shape index: {}]
  %s2 = inlined_call_operand.vmem [shape: f32[6,256], index: 2, kind: input, shape index: {}]
  %s3 = inlined_call_operand.hbm [shape: f32[6,256], index: 3, kind: output, shape index: {}]
  %s4 = sld [smem:[#allocation0]]
  $region22: #{tpu_custom_call.1} parent=0
    _
  %s6 = ssub.s32 1, %s4
  %s7 = scalar_select 0, %s6, %s4
  $region1: #{tpu_custom_call.1} parent=0
    #allocation2 [shape = 'u8[8192]{0}', space=vmem, size = 0x2000, scoped, tag = 'output window, operand 0, single buffered']
    #allocation3 [shape = 's32[1]{0}', space=sflag, size = 0x4, scoped, tag = 'scoped memory for tpu_custom_call.1']
    %8 = vsyncpa [#allocation3], 0
    // Predicated region
    $region2: #{tpu_custom_call.1} parent=1 // pred_check
      _
    $region3: #{tpu_custom_call.1} parent=1 // pred_check_branch
      %10 = sbr.rel (0) target = $region5
    $region4: #{tpu_custom_call.1} parent=1 // pred_region
      _
    $region5: #{tpu_custom_call.1} parent=1 // pred_fallthru
      _
    // Predicated region
    $region6: #{tpu_custom_call.1} parent=1 // pred_check
      _
    $region7: #{tpu_custom_call.1} parent=1 // pred_check_branch
      %12 = sbr.rel (0) target = $region9
    $region8: #{tpu_custom_call.1} parent=1 // pred_region
      _
    $region9: #{tpu_custom_call.1} parent=1 // pred_fallthru
      _
    // Predicated region
    $region10: #{tpu_custom_call.1} parent=1 // pred_check
      _
    $region11: #{tpu_custom_call.1} parent=1 // pred_check_branch
      %14 = sbr.rel (0) target = $region13
    $region12: #{tpu_custom_call.1} parent=1 // pred_region
      _
    $region13: #{tpu_custom_call.1} parent=1 // pred_fallthru
      _
    %v15 = vld [vmem:[%s2] sm:$0x3f]
    %v16 = vld [vmem:[%s2 + $0x8] sm:$0x3f]
    %v17 = vld [vmem:[%s0] sm:$0x3f]
    %19 = vset.pattern.permute.xlu0 0
    %20 = vperm.xlu0 %19, %v17
    %v21 = vpop.permute.xlu0 %20
    %v23 = vmul.f32 %v15, %v21
    %v24 = vmul.f32 %v16, %v21
    %v25 = vld [vmem:[%s1] sm:$0x3f]
    %27 = vset.pattern.permute.xlu0 0
    %28 = vperm.xlu0 %27, %v25
    %v29 = vpop.permute.xlu0 %28
    %v31 = vadd.f32 %v23, %v29
    %v32 = vadd.f32 %v24, %v29
    %33 = vst [vmem:[#allocation2] sm:$0x3f] %v31
    %34 = vst [vmem:[#allocation2 + $0x8] sm:$0x3f] %v32
    // Predicated region
    $region14: #{tpu_custom_call.1} parent=1 // pred_check
      _
    $region15: #{tpu_custom_call.1} parent=1 // pred_check_branch
      %36 = sbr.rel (0) target = $region17
    $region16: #{tpu_custom_call.1} parent=1 // pred_region
      %s38 = ssub.s32 256, 256
      %39 = vsyncadd [#allocation3], %s38
      %s41 = sshll.u32 [#allocation2], 4
      %s42 = int_to_ptr.vmem [resolvable:$true] %s41
      %44 = dma.vmem_to_hbm [thread:$0]  %s42, 256, %s3, [#allocation3]
    $region17: #{tpu_custom_call.1} parent=1 // pred_fallthru
      _
    // Predicated region
    $region18: #{tpu_custom_call.1} parent=1 // pred_check
      _
    $region19: #{tpu_custom_call.1} parent=1 // pred_check_branch
      %46 = sbr.rel (0) target = $region21
    $region20: #{tpu_custom_call.1} parent=1 // pred_region
      %47 = dma.done [#allocation3], 256
    $region21: #{tpu_custom_call.1} parent=1 // pred_fallthru
      _
    %48 = vsyncpa [#allocation3], 1

</llo_original>
